<compile_context>
chip_gen: v6e
topology: v6e:2x2x1
jax: 0.10.0
libtpu: 0.0.40
codegen_flags: <defaults>
</compile_context>

<pallas_src>
import functools
import math

import jax
import jax.numpy as jnp
from jax.experimental import pallas as pl
from jax.experimental.pallas import tpu as pltpu


# ----------------------------------------------------------------------------
# helpers
# ----------------------------------------------------------------------------
def _round_up(x, m):
    return ((x + m - 1) // m) * m


def _vmem_capacity_bytes():
    """Physical VMEM capacity of the current chip (fallback: 64 MiB, v7x)."""
    try:
        return int(pltpu.get_tpu_info().vmem_capacity_bytes)
    except Exception:
        return 64 * 1024 * 1024


def _w_row(w_ref, s):
    """Select row `s` of the (num_steps, C_pad) weight block as a (1, C_pad)
    f32 value via a masked cross-sublane reduction (robust lowering, computed
    once per finalize -- the broadcast is not re-materialized in inner loops)."""
    w = w_ref[...].astype(jnp.float32)
    rows = jax.lax.broadcasted_iota(jnp.int32, w.shape, 0)
    return jnp.sum(jnp.where(rows == s, w, 0.0), axis=0, keepdims=True)


# ----------------------------------------------------------------------------
# kernels
# ----------------------------------------------------------------------------
def _resident_kernel(p_hbm, y_hbm, w_ref, out_ref,
                     p_vmem, x_cur, x_nxt, sem, *, tm):
    """Resident-P path.  grid = (num_steps, num_row_tiles).

    P and Y arrive as raw HBM refs (pl.ANY) and are copied exactly once into
    single-buffered VMEM scratch (no implicit double-buffering of full P)."""
    s = pl.program_id(0)
    i = pl.program_id(1)
    last_i = pl.num_programs(1) - 1

    @pl.when((s == 0) & (i == 0))
    def _init():
        cp_p = pltpu.make_async_copy(p_hbm, p_vmem, sem.at[0])
        cp_y = pltpu.make_async_copy(y_hbm, x_cur, sem.at[1])
        cp_p.start()
        cp_y.start()
        cp_p.wait()
        cp_y.wait()
        out_ref[...] = jnp.zeros_like(out_ref)   # Ref accumulation, zero once.

    row = pl.multiple_of(i * tm, tm)
    # (tm, N_pad) @ (N_pad, C_pad) -> f32 accumulate on the MXU.
    x_new = jnp.dot(p_vmem[pl.ds(row, tm), :], x_cur[...],
                    preferred_element_type=jnp.float32)
    x_nxt[pl.ds(row, tm), :] = x_new.astype(x_nxt.dtype)

    w_row = _w_row(w_ref, s)                      # (1, C_pad) f32
    out_ref[pl.ds(row, tm), :] += x_new * w_row   # accumulate in the out Ref.

    # Advance the walk: after the last row tile of this step, X_cur <- X_next.
    @pl.when(i == last_i)
    def _advance():
        x_cur[...] = x_nxt[...]


def _streamed_kernel(p_ref, y_hbm, w_ref, out_ref,
                     x_cur, x_nxt, acc_ref, sem, *, tm, tk):
    """Streamed-P path.  grid = (num_steps, num_row_tiles, num_k_tiles).

    P arrives tile-by-tile via BlockSpec (double-buffered DMA overlaps the
    MXU); X and the output stay resident in VMEM scratch / the out block."""
    s = pl.program_id(0)
    i = pl.program_id(1)
    k = pl.program_id(2)
    last_i = pl.num_programs(1) - 1
    last_k = pl.num_programs(2) - 1

    @pl.when((s == 0) & (i == 0) & (k == 0))
    def _init():
        cp_y = pltpu.make_async_copy(y_hbm, x_cur, sem.at[0])
        cp_y.start()
        cp_y.wait()
        out_ref[...] = jnp.zeros_like(out_ref)

    @pl.when(k == 0)
    def _zero_acc():
        acc_ref[...] = jnp.zeros_like(acc_ref)

    koff = pl.multiple_of(k * tk, tk)
    acc_ref[...] += jnp.dot(p_ref[...], x_cur[pl.ds(koff, tk), :],
                            preferred_element_type=jnp.float32)

    @pl.when(k == last_k)
    def _finalize():
        row = pl.multiple_of(i * tm, tm)
        res = acc_ref[...]                                  # (tm, C_pad) f32
        x_nxt[pl.ds(row, tm), :] = res.astype(x_nxt.dtype)
        w_row = _w_row(w_ref, s)
        out_ref[pl.ds(row, tm), :] += res * w_row

        @pl.when(i == last_i)
        def _advance():
            x_cur[...] = x_nxt[...]


# ----------------------------------------------------------------------------
# host-side glue
# ----------------------------------------------------------------------------
def _build_padded_operands(edge_index, edge_attr, target, weight,
                           num_classes, n_pad, c_pad, compute_dtype):
    """Build P / Y / W directly at padded sizes (no second full-size copy)."""
    num_nodes = target.shape[0]
    num_steps = weight.shape[1]
    src = edge_index[0]
    dst = edge_index[1]

    # Dense column-normalized transition matrix (normalize in f32, then cast).
    adj = jnp.zeros((n_pad, n_pad), jnp.float32)
    adj = adj.at[dst, src].add(edge_attr.astype(jnp.float32))
    col_sum = jnp.sum(adj, axis=0, keepdims=True)
    p = (adj / jnp.where(col_sum == 0.0, 1.0, col_sum)).astype(compute_dtype)

    # One-hot seeds, built directly at padded size.
    y = jnp.zeros((n_pad, c_pad), jnp.float32)
    y = y.at[jnp.arange(num_nodes), target].set(1.0).astype(compute_dtype)

    # Per-step, per-class coefficients; class axis on the 128-lane dim.
    w = jnp.zeros((num_steps, c_pad), jnp.float32)
    w = w.at[:, :num_classes].set(weight.T.astype(jnp.float32))
    return p, y, w


def random_walk_pallas(edge_index, edge_attr, target, weight, num_classes,
                       *, compute_dtype=jnp.bfloat16, force_streamed=False,
                       tile_m=None, tile_k=None):
    """weight: [num_classes, num_steps] (PyTorch parameter layout)."""
    num_steps = int(weight.shape[1])
    num_nodes = int(target.shape[0])
    c_pad = _round_up(max(num_classes, 128), 128)
    dtype_bytes = jnp.dtype(compute_dtype).itemsize

    vmem_cap = _vmem_capacity_bytes()
    vmem_limit = int(0.8 * vmem_cap)   # ~51 MiB on v7x, ~102 MiB on v5e/v6e.

    # ---- residency decision (generation-aware via VMEM capacity) ----
    tm_res = 256 if num_nodes > 128 else 128
    n_res = _round_up(max(num_nodes, tm_res), tm_res)
    resident_bytes = (n_res * n_res * dtype_bytes          # P, single-buffered
                      + 2 * n_res * c_pad * dtype_bytes    # X_cur / X_next
                      + 2 * n_res * c_pad * 4)             # out block + slack
    use_resident = (not force_streamed) and resident_bytes <= int(0.8 * vmem_limit)

    if use_resident:
        n_pad = n_res
        p, y, w = _build_padded_operands(edge_index, edge_attr, target, weight,
                                         num_classes, n_pad, c_pad, compute_dtype)
        kernel = functools.partial(_resident_kernel, tm=tm_res)
        out = pl.pallas_call(
            kernel,
            out_shape=jax.ShapeDtypeStruct((n_pad, c_pad), jnp.float32),
            grid=(num_steps, n_pad // tm_res),
            in_specs=[
                pl.BlockSpec(memory_space=pl.ANY),   # P: raw HBM, copied once
                pl.BlockSpec(memory_space=pl.ANY),   # Y: raw HBM, copied once
                pl.BlockSpec((num_steps, c_pad), lambda s, i: (0, 0)),
            ],
            out_specs=pl.BlockSpec((n_pad, c_pad), lambda s, i: (0, 0)),
            scratch_shapes=[
                pltpu.VMEM((n_pad, n_pad), compute_dtype),   # resident P
                pltpu.VMEM((n_pad, c_pad), compute_dtype),   # X_cur
                pltpu.VMEM((n_pad, c_pad), compute_dtype),   # X_next
                pltpu.SemaphoreType.DMA((2,)),
            ],
            compiler_params=pltpu.CompilerParams(
                dimension_semantics=("arbitrary", "arbitrary"),
                vmem_limit_bytes=vmem_limit,
            ),
        )(p, y, w)
    else:
        # Deep M/K tiles feed the 2x256^2 MXU on v6e/v7x; fine on v5e too.
        tm = int(tile_m) if tile_m is not None else 512
        tk = int(tile_k) if tile_k is not None else 512
        n_pad = _round_up(max(num_nodes, max(tm, tk)), math.lcm(tm, tk))
        p, y, w = _build_padded_operands(edge_index, edge_attr, target, weight,
                                         num_classes, n_pad, c_pad, compute_dtype)
        kernel = functools.partial(_streamed_kernel, tm=tm, tk=tk)
        out = pl.pallas_call(
            kernel,
            out_shape=jax.ShapeDtypeStruct((n_pad, c_pad), jnp.float32),
            grid=(num_steps, n_pad // tm, n_pad // tk),
            in_specs=[
                pl.BlockSpec((tm, tk), lambda s, i, k: (i, k)),  # streamed P
                pl.BlockSpec(memory_space=pl.ANY),               # Y
                pl.BlockSpec((num_steps, c_pad), lambda s, i, k: (0, 0)),
            ],
            out_specs=pl.BlockSpec((n_pad, c_pad), lambda s, i, k: (0, 0)),
            scratch_shapes=[
                pltpu.VMEM((n_pad, c_pad), compute_dtype),   # X_cur
                pltpu.VMEM((n_pad, c_pad), compute_dtype),   # X_next
                pltpu.VMEM((tm, c_pad), jnp.float32),        # f32 row-tile acc
                pltpu.SemaphoreType.DMA((2,)),
            ],
            compiler_params=pltpu.CompilerParams(
                dimension_semantics=("arbitrary", "arbitrary", "arbitrary"),
                vmem_limit_bytes=vmem_limit,
            ),
        )(p, y, w)

    return out[:num_nodes, :num_classes]


# ----------------------------------------------------------------------------
# pure-JAX reference + demo
# ----------------------------------------------------------------------------
def _reference(edge_index, edge_attr, target, weight, num_classes):
    num_steps = weight.shape[1]
    num_nodes = int(target.shape[0])
    src, dst = edge_index[0], edge_index[1]
    adj = jnp.zeros((num_nodes, num_nodes), jnp.float32)
    adj = adj.at[dst, src].add(edge_attr.astype(jnp.float32))
    col_sum = jnp.sum(adj, axis=0, keepdims=True)
    p = adj / jnp.where(col_sum == 0.0, 1.0, col_sum)
    x = jax.nn.one_hot(target, num_classes, dtype=jnp.float32)
    out = jnp.zeros_like(x)
    for k in range(num_steps):
        x = p @ x
        out = out + x * weight[:, k][None, :]
    return out


def _make_graph(key, num_nodes, num_edges, num_classes):
    k1, k2, k3, k4 = jax.random.split(key, 4)
    src = jax.random.randint(k1, (num_edges,), 0, num_nodes, dtype=jnp.int32)
    dst = jax.random.randint(k2, (num_edges,), 0, num_nodes, dtype=jnp.int32)
    edge_index = jnp.stack([src, dst], axis=0)
    edge_attr = jax.random.uniform(k3, (num_edges,), jnp.float32,
                                   minval=0.1, maxval=1.0)
    target = jax.random.randint(k4, (num_nodes,), 0, num_classes, dtype=jnp.int32)
    return edge_index, edge_attr, target


if __name__ == "__main__":
    num_classes = 4
    num_steps = 8

    key = jax.random.PRNGKey(0)
    kg1, kg2, kw = jax.random.split(key, 3)

    # Small graph (resident path) and a slightly larger one (multi-tile grid).
    ei1, ea1, tg1 = _make_graph(kg1, 16, 40, num_classes)
    ei2, ea2, tg2 = _make_graph(kg2, 200, 800, num_classes)

    # Parameter init matching torch_geometric's uniform(size, weight):
    # U(-1/sqrt(num_steps), 1/sqrt(num_steps)), shape [num_classes, num_steps].
    bound = 1.0 / math.sqrt(num_steps)
    weight = jax.random.uniform(kw, (num_classes, num_steps), jnp.float32,
                                minval=-bound, maxval=bound)

    ref1 = _reference(ei1, ea1, tg1, weight, num_classes)
    ref2 = _reference(ei2, ea2, tg2, weight, num_classes)

    # 1) resident path, f32 compute (bitwise-accuracy sanity check).
    out = jax.block_until_ready(
        random_walk_pallas(ei1, ea1, tg1, weight, num_classes,
                           compute_dtype=jnp.float32))
    assert out.shape == (16, num_classes)
    assert jnp.allclose(out, ref1, atol=5e-3, rtol=5e-3), "resident f32 mismatch"

    # 2) resident path, default bf16 compute / f32 accumulation.
    out = jax.block_until_ready(
        random_walk_pallas(ei1, ea1, tg1, weight, num_classes))
    assert jnp.allclose(out, ref1, atol=5e-2, rtol=5e-2), "resident bf16 mismatch"

    # 3) streamed/tiled path (forced) with small tiles -> grid (8, 2, 2), f32.
    out = jax.block_until_ready(
        random_walk_pallas(ei2, ea2, tg2, weight, num_classes,
                           compute_dtype=jnp.float32,
                           force_streamed=True, tile_m=128, tile_k=128))
    assert out.shape == (200, num_classes)
    assert jnp.allclose(out, ref2, atol=5e-3, rtol=5e-3), "streamed f32 mismatch"

    # 4) streamed path, bf16 compute.
    out = jax.block_until_ready(
        random_walk_pallas(ei2, ea2, tg2, weight, num_classes,
                           force_streamed=True, tile_m=128, tile_k=128))
    assert jnp.allclose(out, ref2, atol=5e-2, rtol=5e-2), "streamed bf16 mismatch"

    print("KERNEL_OK")
</pallas_src>

<mosaic_0001>
module attributes {stable_mosaic.version = 11 : i64} {
  func.func @_resident_kernel(%arg0: i32, %arg1: i32, %arg2: memref<128x128xf32, #tpu.memory_space<any>>, %arg3: memref<128x128xf32, #tpu.memory_space<any>>, %arg4: memref<8x128xf32, #tpu.memory_space<vmem>>, %arg5: memref<128x128xf32, #tpu.memory_space<vmem>>, %arg6: memref<128x128xf32, #tpu.memory_space<vmem>>, %arg7: memref<128x128xf32, #tpu.memory_space<vmem>>, %arg8: memref<128x128xf32, #tpu.memory_space<vmem>>, %arg9: memref<2x!tpu.dma_semaphore, #tpu.memory_space<semaphore_mem>>) attributes {dimension_semantics = [#tpu.dimension_semantics<arbitrary>, #tpu.dimension_semantics<arbitrary>], iteration_bounds = array<i64: 8, 1>, scalar_prefetch = 0 : i64, scratch_operands = 4 : i64, tpu.core_type = #tpu.core_type<tc>, window_params = [{}, {}, {pipeline_mode = #tpu.pipeline_mode<synchronous>, transform_indices = @transform_2, window_bounds = array<i64: 8, 128>}, {pipeline_mode = #tpu.pipeline_mode<synchronous>, transform_indices = @transform_3, window_bounds = array<i64: 128, 128>}]} {
    %c0_i32 = arith.constant 0 : i32
    %0 = arith.cmpi eq, %arg0, %c0_i32 : i32
    %c0_i32_0 = arith.constant 0 : i32
    %1 = arith.cmpi eq, %arg1, %c0_i32_0 : i32
    %2 = arith.andi %0, %1 : i1
    %3 = arith.extui %2 : i1 to i32
    %c0_i32_1 = arith.constant 0 : i32
    %4 = arith.cmpi ne, %3, %c0_i32_1 : i32
    scf.if %4 {
      %c0_i32_13 = arith.constant 0 : i32
      %31 = tpu.memref_slice %arg9[%c0_i32_13] : memref<2x!tpu.dma_semaphore, #tpu.memory_space<semaphore_mem>> -> memref<1x!tpu.dma_semaphore, #tpu.memory_space<semaphore_mem>>
      %32 = tpu.memref_squeeze %31 : memref<1x!tpu.dma_semaphore, #tpu.memory_space<semaphore_mem>> -> memref<!tpu.dma_semaphore, #tpu.memory_space<semaphore_mem>>
      tpu.enqueue_dma source(%arg2 : memref<128x128xf32, #tpu.memory_space<any>>) target(%arg6 : memref<128x128xf32, #tpu.memory_space<vmem>>) target_semaphore(%32 : memref<!tpu.dma_semaphore, #tpu.memory_space<semaphore_mem>>)
      %c1_i32 = arith.constant 1 : i32
      %33 = tpu.memref_slice %arg9[%c1_i32] : memref<2x!tpu.dma_semaphore, #tpu.memory_space<semaphore_mem>> -> memref<1x!tpu.dma_semaphore, #tpu.memory_space<semaphore_mem>>
      %34 = tpu.memref_squeeze %33 : memref<1x!tpu.dma_semaphore, #tpu.memory_space<semaphore_mem>> -> memref<!tpu.dma_semaphore, #tpu.memory_space<semaphore_mem>>
      tpu.enqueue_dma source(%arg3 : memref<128x128xf32, #tpu.memory_space<any>>) target(%arg7 : memref<128x128xf32, #tpu.memory_space<vmem>>) target_semaphore(%34 : memref<!tpu.dma_semaphore, #tpu.memory_space<semaphore_mem>>)
      %c0_i32_14 = arith.constant 0 : i32
      %35 = tpu.memref_slice %arg9[%c0_i32_14] : memref<2x!tpu.dma_semaphore, #tpu.memory_space<semaphore_mem>> -> memref<1x!tpu.dma_semaphore, #tpu.memory_space<semaphore_mem>>
      %36 = tpu.memref_squeeze %35 : memref<1x!tpu.dma_semaphore, #tpu.memory_space<semaphore_mem>> -> memref<!tpu.dma_semaphore, #tpu.memory_space<semaphore_mem>>
      tpu.wait_dma2 semaphore(%36 : memref<!tpu.dma_semaphore, #tpu.memory_space<semaphore_mem>>) src(%arg2 : memref<128x128xf32, #tpu.memory_space<any>>) dst(%arg6 : memref<128x128xf32, #tpu.memory_space<vmem>>)
      %c1_i32_15 = arith.constant 1 : i32
      %37 = tpu.memref_slice %arg9[%c1_i32_15] : memref<2x!tpu.dma_semaphore, #tpu.memory_space<semaphore_mem>> -> memref<1x!tpu.dma_semaphore, #tpu.memory_space<semaphore_mem>>
      %38 = tpu.memref_squeeze %37 : memref<1x!tpu.dma_semaphore, #tpu.memory_space<semaphore_mem>> -> memref<!tpu.dma_semaphore, #tpu.memory_space<semaphore_mem>>
      tpu.wait_dma2 semaphore(%38 : memref<!tpu.dma_semaphore, #tpu.memory_space<semaphore_mem>>) src(%arg3 : memref<128x128xf32, #tpu.memory_space<any>>) dst(%arg7 : memref<128x128xf32, #tpu.memory_space<vmem>>)
      %cst_16 = arith.constant 0.000000e+00 : f32
      %39 = vector.broadcast %cst_16 : f32 to vector<128x128xf32>
      %c0_17 = arith.constant 0 : index
      %c0_18 = arith.constant 0 : index
      %40 = vector.load %arg5[%c0_17, %c0_18] : memref<128x128xf32, #tpu.memory_space<vmem>>, vector<128x128xf32>
      tpu.vector_store %arg5[%c0_17, %c0_18], %39 {strides = array<i32>} : memref<128x128xf32, #tpu.memory_space<vmem>>, vector<128x128xf32>,
    } else {
    }
    %c128_i32 = arith.constant 128 : i32
    %5 = arith.muli %arg1, %c128_i32 : i32
    %6 = tpu.assume_multiple %5, 128 : i32
    %7 = arith.index_cast %6 : i32 to index
    %c0 = arith.constant 0 : index
    %8 = vector.load %arg6[%7, %c0] : memref<128x128xf32, #tpu.memory_space<vmem>>, vector<128x128xf32>
    %c0_2 = arith.constant 0 : index
    %c0_3 = arith.constant 0 : index
    %9 = vector.load %arg7[%c0_2, %c0_3] : memref<128x128xf32, #tpu.memory_space<vmem>>, vector<128x128xf32>
    %cst = arith.constant dense<0.000000e+00> : vector<128x128xf32>
    %10 = tpu.matmul %8, %9, %cst {dimension_numbers = #tpu.dot_dimension_numbers<[1], [0], [0], [1], [0, 0, 1, 1], [], []>} : vector<128x128xf32>, vector<128x128xf32>, vector<128x128xf32> -> vector<128x128xf32>
    %11 = arith.index_cast %6 : i32 to index
    %c0_4 = arith.constant 0 : index
    %12 = vector.load %arg8[%11, %c0_4] : memref<128x128xf32, #tpu.memory_space<vmem>>, vector<128x128xf32>
    tpu.vector_store %arg8[%11, %c0_4], %10 {strides = array<i32>} : memref<128x128xf32, #tpu.memory_space<vmem>>, vector<128x128xf32>,
    %c0_5 = arith.constant 0 : index
    %c0_6 = arith.constant 0 : index
    %13 = vector.load %arg4[%c0_5, %c0_6] : memref<8x128xf32, #tpu.memory_space<vmem>>, vector<8x128xf32>
    %14 = tpu.iota {dimensions = array<i32: 0>} : vector<8x128xi32>
    %15 = vector.broadcast %arg0 : i32 to vector<8x128xi32>
    %16 = arith.cmpi eq, %14, %15 : vector<8x128xi32>
    %cst_7 = arith.constant 0.000000e+00 : f32
    %17 = vector.broadcast %cst_7 : f32 to vector<8x128xf32>
    %18 = arith.select %16, %13, %17 : vector<8x128xi1>, vector<8x128xf32>
    %cst_8 = arith.constant dense<0.000000e+00> : vector<128xf32>
    %19 = vector.multi_reduction <add>, %18, %cst_8 [0] : vector<8x128xf32> to vector<128xf32>
    %20 = vector.shape_cast %19 : vector<128xf32> to vector<1x128xf32>
    %21 = arith.index_cast %6 : i32 to index
    %c0_9 = arith.constant 0 : index
    %22 = vector.load %arg5[%21, %c0_9] : memref<128x128xf32, #tpu.memory_space<vmem>>, vector<128x128xf32>
    %23 = vector.broadcast %20 : vector<1x128xf32> to vector<128x128xf32>
    %24 = arith.mulf %10, %23 : vector<128x128xf32>
    %25 = arith.addf %22, %24 : vector<128x128xf32>
    %26 = arith.index_cast %6 : i32 to index
    %c0_10 = arith.constant 0 : index
    %27 = vector.load %arg5[%26, %c0_10] : memref<128x128xf32, #tpu.memory_space<vmem>>, vector<128x128xf32>
    tpu.vector_store %arg5[%26, %c0_10], %25 {strides = array<i32>} : memref<128x128xf32, #tpu.memory_space<vmem>>, vector<128x128xf32>,
    %c0_i32_11 = arith.constant 0 : i32
    %28 = arith.cmpi eq, %arg1, %c0_i32_11 : i32
    %29 = arith.extui %28 : i1 to i32
    %c0_i32_12 = arith.constant 0 : i32
    %30 = arith.cmpi ne, %29, %c0_i32_12 : i32
    scf.if %30 {
      %c0_13 = arith.constant 0 : index
      %c0_14 = arith.constant 0 : index
      %31 = vector.load %arg8[%c0_13, %c0_14] : memref<128x128xf32, #tpu.memory_space<vmem>>, vector<128x128xf32>
      %c0_15 = arith.constant 0 : index
      %c0_16 = arith.constant 0 : index
      %32 = vector.load %arg7[%c0_15, %c0_16] : memref<128x128xf32, #tpu.memory_space<vmem>>, vector<128x128xf32>
      tpu.vector_store %arg7[%c0_15, %c0_16], %31 {strides = array<i32>} : memref<128x128xf32, #tpu.memory_space<vmem>>, vector<128x128xf32>,
    } else {
    }
    return
  }
  func.func @transform_2(%arg0: i32, %arg1: i32) -> (i32, i32) {
    %c0_i32 = arith.constant 0 : i32
    %c0_i32_0 = arith.constant 0 : i32
    %c0_i32_1 = arith.constant 0 : i32
    return %c0_i32, %c0_i32_0 : i32, i32
  }
  func.func @transform_3(%arg0: i32, %arg1: i32) -> (i32, i32) {
    %c0_i32 = arith.constant 0 : i32
    %c0_i32_0 = arith.constant 0 : i32
    %c0_i32_1 = arith.constant 0 : i32
    return %c0_i32, %c0_i32_0 : i32, i32
  }
}

</mosaic_0001>

<llo_original>
// kernel: tpu_custom_call.1
$region0: #{tpu_custom_call.1}
  #allocation0 [shape = 'u32[]', space=smem, size = 0x4, offset = 0x4, fixed_abs, tag = 'smem constant byte address 0x4 - core index']
  #allocation1 [shape = 'u32[144,128]{1,0:T(1,128)}', space=vmem, size = 0x12000, scoped, tag = 'internal scratch']
  #allocation2 [shape = 'f32[128,128]{1,0:T(8,128)}', space=vmem, size = 0x10000, scoped, tag = 'scratch operand']
  #allocation3 [shape = 'f32[128,128]{1,0:T(8,128)}', space=vmem, size = 0x10000, scoped, tag = 'scratch operand']
  #allocation4 [shape = 'f32[128,128]{1,0:T(8,128)}', space=vmem, size = 0x10000, scoped, tag = 'scratch operand']
  #allocation5 [shape = 's32[2]{0}', space=sflag, size = 0x8, scoped, tag = 'scratch operand']
  #allocation10 [shape = 's32[]', space=sflag, size = 0x4, offset = 0, fixed_abs, tag = 'sflag constant byte address 0x0 - dummy sync flag']
  #allocation11 [shape = 's32[]', space=sflag, size = 0x4, offset = 0, fixed_abs, tag = 'sflag constant byte address 0x0 - dummy sync flag']
  #allocation12 [shape = 'u32[]', space=smem, size = 0x4, offset = 0x44, fixed_abs, tag = 'smem constant byte address 0x44 - assertion arg 0']
  #allocation13 [shape = 'u32[]', space=smem, size = 0x4, offset = 0x48, fixed_abs, tag = 'smem constant byte address 0x48 - assertion arg 1']
  #allocation14 [shape = 's32[]', space=sflag, size = 0x4, offset = 0, fixed_abs, tag = 'sflag constant byte address 0x0 - dummy sync flag']
  #allocation15 [shape = 's32[]', space=sflag, size = 0x4, offset = 0, fixed_abs, tag = 'sflag constant byte address 0x0 - dummy sync flag']
  %s0 = inlined_call_operand.hbm [shape: f32[128,128], index: 0, kind: input, shape index: {}]
  %s1 = inlined_call_operand.hbm [shape: f32[128,128], index: 1, kind: input, shape index: {}]
  %s2 = inlined_call_operand.hbm [shape: f32[8,128], index: 2, kind: input, shape index: {}]
  %s3 = inlined_call_operand.hbm [shape: f32[128,128], index: 3, kind: output, shape index: {}]
  %s4 = sld [smem:[#allocation0]]
  $region57: #{tpu_custom_call.1} parent=0
    _
  %s6 = ssub.s32 1, %s4
  %s7 = scalar_select 0, %s6, %s4
  $region1: #{tpu_custom_call.1} parent=0
    #allocation6 [shape = 'u8[4096]{0}', space=vmem, size = 0x1000, scoped, tag = 'input window, operand 2, single buffered']
    #allocation7 [shape = 's32[2]{0}', space=sflag, size = 0x8, scoped, tag = 'scoped memory for tpu_custom_call.1']
    #allocation8 [shape = 's32[2]{0}', space=sflag, size = 0x8, scoped, tag = 'scoped memory for tpu_custom_call.1']
    #allocation9 [shape = 'u8[65536]{0}', space=vmem, size = 0x10000, scoped, tag = 'output window, operand 0, single buffered']
    %8 = vsyncpa [#allocation7], 0
    %9 = vsyncpa [#allocation8], 0
    loop: start=0, step=1, limit=10
    $region2: #{tpu_custom_call.1} parent=1 // loop_pre_header
      _
    $region3: #{tpu_custom_call.1} parent=1 // loop_header
      %s11 = sphi 0, %s15
      %p12 = scmp.ge.s32.totalorder %s11, 10
      %s18 = sphi 0, %s30
      %s19 = sphi 0, %s26
      %s20 = sphi 0, %s18
      %s21 = sphi 0, %s19
      %s22 = sphi 0, %s20
      %s23 = sphi 0, %s21
      %s31 = sphi 0, %s31
      %s33 = sphi 0, %s31
      %s34 = sphi 0, %s33
      %s48 = sphi 0, %s34
      %s52 = sphi 0, %s52
      %s54 = sphi 0, %s52
      %s55 = sphi 0, %s54
      %s69 = sphi 0, %s55
    $region4: #{tpu_custom_call.1} parent=1 // loop_header_branch
      %14 = sbr.rel (%p12) target = $region8
    $region5: #{tpu_custom_call.1} parent=1 // loop_body
      %s16 = ssub.s32 %s11, 1
      %s17 = ssub.s32 %s11, 2
      %s24 = sadd.s32 1, %s19
      %p25 = scmp.ge.s32.totalorder %s24, 1
      %s26 = scalar_select %p25, 0, %s24
      %s27 = sadd.s32 1, %s18
      %s28 = scalar_select %p25, %s27, %s18
      %p29 = scmp.ge.s32.totalorder %s28, 8
      %s30 = scalar_select %p29, 0, %s28
      %s32 = sadd.s32 %s31, 1
      %p35 = scmp.eq.s32.totalorder %s11, 7
      %p36 = scmp.ne.s32.totalorder %s31, %s33
      %p37 = scmp.eq.s32.totalorder %s11, 0
      %p38 = por %p36, %p37
      %p39 = scmp.ne.s32.totalorder %s31, %s33
      %p40 = scmp.eq.s32.totalorder %s16, 7
      %p41 = por %p39, %p40
      %p42 = scmp.ne.s32.totalorder %s33, %s34
      %p43 = scmp.eq.s32.totalorder %s16, 0
      %p44 = por %p42, %p43
      %p45 = scmp.ne.s32.totalorder %s33, %s34
      %p46 = scmp.eq.s32.totalorder %s17, 7
      %p47 = por %p45, %p46
      %p49 = scmp.ne.s32.totalorder %s34, %s48
      %p50 = scmp.eq.s32.totalorder %s17, 0
      %p51 = por %p49, %p50
      %s53 = sadd.s32 %s52, 1
      %p56 = scmp.eq.s32.totalorder %s11, 7
      %p57 = scmp.ne.s32.totalorder %s52, %s54
      %p58 = scmp.eq.s32.totalorder %s11, 0
      %p59 = por %p57, %p58
      %p60 = scmp.ne.s32.totalorder %s52, %s54
      %p61 = scmp.eq.s32.totalorder %s16, 7
      %p62 = por %p60, %p61
      %p63 = scmp.ne.s32.totalorder %s54, %s55
      %p64 = scmp.eq.s32.totalorder %s16, 0
      %p65 = por %p63, %p64
      %p66 = scmp.ne.s32.totalorder %s54, %s55
      %p67 = scmp.eq.s32.totalorder %s17, 7
      %p68 = por %p66, %p67
      %p70 = scmp.ne.s32.totalorder %s55, %s69
      %p71 = scmp.eq.s32.totalorder %s17, 0
      %p72 = por %p70, %p71
      %p73 = scmp.le.s32.totalorder 1, %s11
      %p74 = scmp.lt.s32.totalorder %s11, 9
      %p75 = pnand %p73, %p74
      %p76 = pneg %p75
      // Predicated region
      $region9: #{tpu_custom_call.1} parent=5 // pred_check
        _
      $region10: #{tpu_custom_call.1} parent=5 // pred_check_branch
        %78 = sbr.rel (%p75) target = $region12
      $region11: #{tpu_custom_call.1} parent=5 // pred_region
        %s79 = ssub.s32 %s11, 1
        // Predicated region
        $region13: #{tpu_custom_call.1} parent=11 // pred_check
          %p80 = pneg %p44
        $region14: #{tpu_custom_call.1} parent=11 // pred_check_branch
          %82 = sbr.rel (%p80) target = $region16
        $region15: #{tpu_custom_call.1} parent=11 // pred_region
          %s84 = ssub.s32 128, 128
          %85 = vsyncadd [#allocation7], %s84
          %s87 = sshll.u32 [#allocation6], 4
          %s88 = int_to_ptr.vmem [resolvable:$true] %s87
          %90 = dma.hbm_to_vmem [thread:$0]  %s2, 128, %s88, [#allocation7]
        $region16: #{tpu_custom_call.1} parent=11 // pred_fallthru
          _
      $region12: #{tpu_custom_call.1} parent=5 // pred_fallthru
        _
      %p91 = scmp.lt.s32.totalorder %s11, 8
      // Predicated region
      $region17: #{tpu_custom_call.1} parent=5 // pred_check
        %p92 = pneg %p91
      $region18: #{tpu_custom_call.1} parent=5 // pred_check_branch
        %94 = sbr.rel (%p92) target = $region20
      $region19: #{tpu_custom_call.1} parent=5 // pred_region
        _
      $region20: #{tpu_custom_call.1} parent=5 // pred_fallthru
        _
      %p95 = scmp.le.s32.totalorder 1, %s11
      %p96 = scmp.lt.s32.totalorder %s11, 9
      %p97 = pnand %p95, %p96
      %p98 = pneg %p97
      // Predicated region
      $region21: #{tpu_custom_call.1} parent=5 // pred_check
        _
      $region22: #{tpu_custom_call.1} parent=5 // pred_check_branch
        %100 = sbr.rel (%p97) target = $region24
      $region23: #{tpu_custom_call.1} parent=5 // pred_region
        %s101 = ssub.s32 %s11, 1
        // Predicated region
        $region25: #{tpu_custom_call.1} parent=23 // pred_check
          %p102 = pneg %p44
        $region26: #{tpu_custom_call.1} parent=23 // pred_check_branch
          %104 = sbr.rel (%p102) target = $region28
        $region27: #{tpu_custom_call.1} parent=23 // pred_region
          %105 = dma.done [#allocation7], 128
        $region28: #{tpu_custom_call.1} parent=23 // pred_fallthru
          _
        %p106 = pneg %p44
        %p107 = pneg %p41
        %p108 = pneg %p65
        %p109 = pneg %p62
        %p110 = scmp.eq.s32.totalorder %s20, 0
        %p111 = scmp.eq.s32.totalorder %s21, 0
        %p112 = pnand %p110, %p111
        %p113 = pneg %p112
        // Predicated region
        $region29: #{tpu_custom_call.1} parent=23 // pred_check
          _
        $region30: #{tpu_custom_call.1} parent=23 // pred_check_branch
          %115 = sbr.rel (%p112) target = $region32
        $region31: #{tpu_custom_call.1} parent=23 // pred_region
          // Predicated region
          $region33: #{tpu_custom_call.1} parent=31 // pred_check
            _
          $region34: #{tpu_custom_call.1} parent=31 // pred_check_branch
            %117 = sbr.rel target = $region36
          $region35: #{tpu_custom_call.1} parent=31 // pred_region
            %118 = sst [smem:[#allocation12]] [#allocation11]
            %119 = sst [smem:[#allocation13]] [#allocation10]
          $region36: #{tpu_custom_call.1} parent=31 // pred_fallthru
            _
          %121 = shalt.err (0)
          %s123 = sshll.u32 [#allocation2], 4
          %s124 = int_to_ptr.vmem [resolvable:$true] %s123
          %126 = dma.hbm_to_vmem [thread:$0]  %s0, 2048, %s124, [#allocation5]
          %s127 = scalar_lea.sflag [#allocation5], 1
          // Predicated region
          $region37: #{tpu_custom_call.1} parent=31 // pred_check
            _
          $region38: #{tpu_custom_call.1} parent=31 // pred_check_branch
            %129 = sbr.rel target = $region40
          $region39: #{tpu_custom_call.1} parent=31 // pred_region
            %130 = sst [smem:[#allocation12]] [#allocation15]
            %131 = sst [smem:[#allocation13]] [#allocation14]
          $region40: #{tpu_custom_call.1} parent=31 // pred_fallthru
            _
          %133 = shalt.err (0)
          %s135 = sshll.u32 [#allocation3], 4
          %s136 = int_to_ptr.vmem [resolvable:$true] %s135
          %138 = dma.hbm_to_vmem [thread:$0]  %s1, 2048, %s136, %s127
          %s139 = smul.u32 128, 1
          %s140 = sshll.u32 %s139, 4
          %141 = dma.done [#allocation5], %s140
          %s142 = sshll.u32 %s139, 4
          %143 = dma.done %s127, %s142
          %144 = vst [vmem:[#allocation9] sm:$0xff] 0.0
          %145 = vst [vmem:[#allocation9 + $0x8] sm:$0xff] 0.0
          %146 = vst [vmem:[#allocation9 + $0x10] sm:$0xff] 0.0
          %147 = vst [vmem:[#allocation9 + $0x18] sm:$0xff] 0.0
          %148 = vst [vmem:[#allocation9 + $0x20] sm:$0xff] 0.0
          %149 = vst [vmem:[#allocation9 + $0x28] sm:$0xff] 0.0
          %150 = vst [vmem:[#allocation9 + $0x30] sm:$0xff] 0.0
          %151 = vst [vmem:[#allocation9 + $0x38] sm:$0xff] 0.0
          %152 = vst [vmem:[#allocation9 + $0x40] sm:$0xff] 0.0
          %153 = vst [vmem:[#allocation9 + $0x48] sm:$0xff] 0.0
          %154 = vst [vmem:[#allocation9 + $0x50] sm:$0xff] 0.0
          %155 = vst [vmem:[#allocation9 + $0x58] sm:$0xff] 0.0
          %156 = vst [vmem:[#allocation9 + $0x60] sm:$0xff] 0.0
          %157 = vst [vmem:[#allocation9 + $0x68] sm:$0xff] 0.0
          %158 = vst [vmem:[#allocation9 + $0x70] sm:$0xff] 0.0
          %159 = vst [vmem:[#allocation9 + $0x78] sm:$0xff] 0.0
        $region32: #{tpu_custom_call.1} parent=23 // pred_fallthru
          _
        %s160 = smul.u32 %s21, 128
        %s161 = scalar_lea.vmem [#allocation2], %s160
        %v162 = vld [vmem:[%s161] sm:$0xff]
        %v163 = vld [vmem:[%s161 + $0x8] sm:$0xff]
        %v164 = vld [vmem:[%s161 + $0x10] sm:$0xff]
        %v165 = vld [vmem:[%s161 + $0x18] sm:$0xff]
        %v166 = vld [vmem:[%s161 + $0x20] sm:$0xff]
        %v167 = vld [vmem:[%s161 + $0x28] sm:$0xff]
        %v168 = vld [vmem:[%s161 + $0x30] sm:$0xff]
        %v169 = vld [vmem:[%s161 + $0x38] sm:$0xff]
        %v170 = vld [vmem:[%s161 + $0x40] sm:$0xff]
        %v171 = vld [vmem:[%s161 + $0x48] sm:$0xff]
        %v172 = vld [vmem:[%s161 + $0x50] sm:$0xff]
        %v173 = vld [vmem:[%s161 + $0x58] sm:$0xff]
        %v174 = vld [vmem:[%s161 + $0x60] sm:$0xff]
        %v175 = vld [vmem:[%s161 + $0x68] sm:$0xff]
        %v176 = vld [vmem:[%s161 + $0x70] sm:$0xff]
        %v177 = vld [vmem:[%s161 + $0x78] sm:$0xff]
        %v178 = vld [vmem:[#allocation3] sm:$0xff]
        %v179 = vld [vmem:[#allocation3 + $0x8] sm:$0xff]
        %v180 = vld [vmem:[#allocation3 + $0x10] sm:$0xff]
        %v181 = vld [vmem:[#allocation3 + $0x18] sm:$0xff]
        %v182 = vld [vmem:[#allocation3 + $0x20] sm:$0xff]
        %v183 = vld [vmem:[#allocation3 + $0x28] sm:$0xff]
        %v184 = vld [vmem:[#allocation3 + $0x30] sm:$0xff]
        %v185 = vld [vmem:[#allocation3 + $0x38] sm:$0xff]
        %v186 = vld [vmem:[#allocation3 + $0x40] sm:$0xff]
        %v187 = vld [vmem:[#allocation3 + $0x48] sm:$0xff]
        %v188 = vld [vmem:[#allocation3 + $0x50] sm:$0xff]
        %v189 = vld [vmem:[#allocation3 + $0x58] sm:$0xff]
        %v190 = vld [vmem:[#allocation3 + $0x60] sm:$0xff]
        %v191 = vld [vmem:[#allocation3 + $0x68] sm:$0xff]
        %v192 = vld [vmem:[#allocation3 + $0x70] sm:$0xff]
        %v193 = vld [vmem:[#allocation3 + $0x78] sm:$0xff]
        %194 = vmatprep.subr.mxu0 0.0
        %195 = vmatpush1.msra.mxu0 %v193
        %196 = vmatprep.subr.mxu0 0.0
        %197 = vmatpush1.msra.mxu0 %v192
        %198 = vmatprep.subr.mxu0 0.0
        %199 = vmatpush1.msra.mxu0 %v191
        %200 = vmatprep.subr.mxu0 0.0
        %201 = vmatpush1.msra.mxu0 %v190
        %202 = vmatprep.subr.mxu0 0.0
        %203 = vmatpush1.msra.mxu0 %v189
        %204 = vmatprep.subr.mxu0 0.0
        %205 = vmatpush1.msra.mxu0 %v188
        %206 = vmatprep.subr.mxu0 0.0
        %207 = vmatpush1.msra.mxu0 %v187
        %208 = vmatprep.subr.mxu0 0.0
        %209 = vmatpush1.msra.mxu0 %v186
        %210 = vmatprep.subr.mxu0 0.0
        %211 = vmatpush1.msra.mxu0 %v185
        %212 = vmatprep.subr.mxu0 0.0
        %213 = vmatpush1.msra.mxu0 %v184
        %214 = vmatprep.subr.mxu0 0.0
        %215 = vmatpush1.msra.mxu0 %v183
        %216 = vmatprep.subr.mxu0 0.0
        %217 = vmatpush1.msra.mxu0 %v182
        %218 = vmatprep.subr.mxu0 0.0
        %219 = vmatpush1.msra.mxu0 %v181
        %220 = vmatprep.subr.mxu0 0.0
        %221 = vmatpush1.msra.mxu0 %v180
        %222 = vmatprep.subr.mxu0 0.0
        %223 = vmatpush1.msra.mxu0 %v179
        %224 = vmatprep.subr.mxu0 0.0
        %225 = vmatpush1.msra.mxu0 %v178
        %226 = vmatprep.subr.mxu0 0.0
        %227 = vmatpush2.msra.mxu0 0.0
        %228 = vmatprep.subr.mxu0 0.0
        %229 = vmatpush2.msra.mxu0 0.0
        %230 = vmatprep.subr.mxu0 0.0
        %231 = vmatpush2.msra.mxu0 0.0
        %232 = vmatprep.subr.mxu0 0.0
        %233 = vmatpush2.msra.mxu0 0.0
        %234 = vmatprep.subr.mxu0 0.0
        %235 = vmatpush2.msra.mxu0 0.0
        %236 = vmatprep.subr.mxu0 0.0
        %237 = vmatpush2.msra.mxu0 0.0
        %238 = vmatprep.subr.mxu0 0.0
        %239 = vmatpush2.msra.mxu0 0.0
        %240 = vmatprep.subr.mxu0 0.0
        %241 = vmatpush2.msra.mxu0 0.0
        %242 = vmatprep.subr.mxu0 0.0
        %243 = vmatpush2.msra.mxu0 0.0
        %244 = vmatprep.subr.mxu0 0.0
        %245 = vmatpush2.msra.mxu0 0.0
        %246 = vmatprep.subr.mxu0 0.0
        %247 = vmatpush2.msra.mxu0 0.0
        %248 = vmatprep.subr.mxu0 0.0
        %249 = vmatpush2.msra.mxu0 0.0
        %250 = vmatprep.subr.mxu0 0.0
        %251 = vmatpush2.msra.mxu0 0.0
        %252 = vmatprep.subr.mxu0 0.0
        %253 = vmatpush2.msra.mxu0 0.0
        %254 = vmatprep.subr.mxu0 0.0
        %255 = vmatpush2.msra.mxu0 0.0
        %256 = vmatprep.subr.mxu0 0.0
        %257 = vmatpush2.msra.mxu0 0.0
        %258 = vmatprep.mubr.f32.mxu0 0.0
        %259 = vmatmul.mubr.f32.gmra.mxu0 %v162
        %v260 = vpop.f32.mrf.mxu0
        %v261 = vadd.f32 0.0, %v260
        %v262 = vpop.f32.mrf.mxu0
        %263 = vmatprep.mubr.f32.mxu0 0.0
        %264 = vmatmul.mubr.f32.gmra.mxu0 %v163
        %v265 = vpop.f32.mrf.mxu0
        %v266 = vadd.f32 0.0, %v265
        %v267 = vpop.f32.mrf.mxu0
        %268 = vmatprep.mubr.f32.mxu0 0.0
        %269 = vmatmul.mubr.f32.gmra.mxu0 %v164
        %v270 = vpop.f32.mrf.mxu0
        %v271 = vadd.f32 0.0, %v270
        %v272 = vpop.f32.mrf.mxu0
        %273 = vmatprep.mubr.f32.mxu0 0.0
        %274 = vmatmul.mubr.f32.gmra.mxu0 %v165
        %v275 = vpop.f32.mrf.mxu0
        %v276 = vadd.f32 0.0, %v275
        %v277 = vpop.f32.mrf.mxu0
        %278 = vmatprep.mubr.f32.mxu0 0.0
        %279 = vmatmul.mubr.f32.gmra.mxu0 %v166
        %v280 = vpop.f32.mrf.mxu0
        %v281 = vadd.f32 0.0, %v280
        %v282 = vpop.f32.mrf.mxu0
        %283 = vmatprep.mubr.f32.mxu0 0.0
        %284 = vmatmul.mubr.f32.gmra.mxu0 %v167
        %v285 = vpop.f32.mrf.mxu0
        %v286 = vadd.f32 0.0, %v285
        %v287 = vpop.f32.mrf.mxu0
        %288 = vmatprep.mubr.f32.mxu0 0.0
        %289 = vmatmul.mubr.f32.gmra.mxu0 %v168
        %v290 = vpop.f32.mrf.mxu0
        %v291 = vadd.f32 0.0, %v290
        %v292 = vpop.f32.mrf.mxu0
        %293 = vmatprep.mubr.f32.mxu0 0.0
        %294 = vmatmul.mubr.f32.gmra.mxu0 %v169
        %v295 = vpop.f32.mrf.mxu0
        %v296 = vadd.f32 0.0, %v295
        %v297 = vpop.f32.mrf.mxu0
        %298 = vmatprep.mubr.f32.mxu0 0.0
        %299 = vmatmul.mubr.f32.gmra.mxu0 %v170
        %v300 = vpop.f32.mrf.mxu0
        %v301 = vadd.f32 0.0, %v300
        %v302 = vpop.f32.mrf.mxu0
        %303 = vmatprep.mubr.f32.mxu0 0.0
        %304 = vmatmul.mubr.f32.gmra.mxu0 %v171
        %v305 = vpop.f32.mrf.mxu0
        %v306 = vadd.f32 0.0, %v305
        %v307 = vpop.f32.mrf.mxu0
        %308 = vmatprep.mubr.f32.mxu0 0.0
        %309 = vmatmul.mubr.f32.gmra.mxu0 %v172
        %v310 = vpop.f32.mrf.mxu0
        %v311 = vadd.f32 0.0, %v310
        %v312 = vpop.f32.mrf.mxu0
        %313 = vmatprep.mubr.f32.mxu0 0.0
        %314 = vmatmul.mubr.f32.gmra.mxu0 %v173
        %v315 = vpop.f32.mrf.mxu0
        %v316 = vadd.f32 0.0, %v315
        %v317 = vpop.f32.mrf.mxu0
        %318 = vmatprep.mubr.f32.mxu0 0.0
        %319 = vmatmul.mubr.f32.gmra.mxu0 %v174
        %v320 = vpop.f32.mrf.mxu0
        %v321 = vadd.f32 0.0, %v320
        %v322 = vpop.f32.mrf.mxu0
        %323 = vmatprep.mubr.f32.mxu0 0.0
        %324 = vmatmul.mubr.f32.gmra.mxu0 %v175
        %v325 = vpop.f32.mrf.mxu0
        %v326 = vadd.f32 0.0, %v325
        %v327 = vpop.f32.mrf.mxu0
        %328 = vmatprep.mubr.f32.mxu0 0.0
        %329 = vmatmul.mubr.f32.gmra.mxu0 %v176
        %v330 = vpop.f32.mrf.mxu0
        %v331 = vadd.f32 0.0, %v330
        %v332 = vpop.f32.mrf.mxu0
        %333 = vmatprep.mubr.f32.mxu0 0.0
        %334 = vmatmul.mubr.f32.gmra.mxu0 %v177
        %v335 = vpop.f32.mrf.mxu0
        %v336 = vadd.f32 0.0, %v335
        %v337 = vpop.f32.mrf.mxu0
        %338 = vdwg.mxu0
        %s339 = scalar_lea.vmem [#allocation4], %s160
        %340 = vst [vmem:[%s339] sm:$0xff] %v261
        %341 = vst [vmem:[%s339 + $0x8] sm:$0xff] %v266
        %342 = vst [vmem:[%s339 + $0x10] sm:$0xff] %v271
        %343 = vst [vmem:[%s339 + $0x18] sm:$0xff] %v276
        %344 = vst [vmem:[%s339 + $0x20] sm:$0xff] %v281
        %345 = vst [vmem:[%s339 + $0x28] sm:$0xff] %v286
        %346 = vst [vmem:[%s339 + $0x30] sm:$0xff] %v291
        %347 = vst [vmem:[%s339 + $0x38] sm:$0xff] %v296
        %348 = vst [vmem:[%s339 + $0x40] sm:$0xff] %v301
        %349 = vst [vmem:[%s339 + $0x48] sm:$0xff] %v306
        %350 = vst [vmem:[%s339 + $0x50] sm:$0xff] %v311
        %351 = vst [vmem:[%s339 + $0x58] sm:$0xff] %v316
        %352 = vst [vmem:[%s339 + $0x60] sm:$0xff] %v321
        %353 = vst [vmem:[%s339 + $0x68] sm:$0xff] %v326
        %354 = vst [vmem:[%s339 + $0x70] sm:$0xff] %v331
        %355 = vst [vmem:[%s339 + $0x78] sm:$0xff] %v336
        %v356 = vld [vmem:[#allocation6] sm:$0xff]
        %v357 = vlaneseq
        %v358 = vshrl.u32 %v357, 7
        %v359 = vstv %s20
        %vm360 = vcmp.eq.s32.totalorder %v358, %v359
        %v361 = vsel %vm360, %v356, 0.0
        %v362 = vrot.slane %v361, 4
        %v363 = vadd.f32 %v361, %v362
        %v364 = vrot.slane %v363, 2
        %v365 = vadd.f32 %v363, %v364
        %v366 = vrot.slane %v365, 1
        %v367 = vadd.f32 %v365, %v366
        %s368 = scalar_lea.vmem [#allocation9], %s160
        %v369 = vld [vmem:[%s368] sm:$0xff]
        %v370 = vld [vmem:[%s368 + $0x8] sm:$0xff]
        %v371 = vld [vmem:[%s368 + $0x10] sm:$0xff]
        %v372 = vld [vmem:[%s368 + $0x18] sm:$0xff]
        %v373 = vld [vmem:[%s368 + $0x20] sm:$0xff]
        %v374 = vld [vmem:[%s368 + $0x28] sm:$0xff]
        %v375 = vld [vmem:[%s368 + $0x30] sm:$0xff]
        %v376 = vld [vmem:[%s368 + $0x38] sm:$0xff]
        %v377 = vld [vmem:[%s368 + $0x40] sm:$0xff]
        %v378 = vld [vmem:[%s368 + $0x48] sm:$0xff]
        %v379 = vld [vmem:[%s368 + $0x50] sm:$0xff]
        %v380 = vld [vmem:[%s368 + $0x58] sm:$0xff]
        %v381 = vld [vmem:[%s368 + $0x60] sm:$0xff]
        %v382 = vld [vmem:[%s368 + $0x68] sm:$0xff]
        %v383 = vld [vmem:[%s368 + $0x70] sm:$0xff]
        %v384 = vld [vmem:[%s368 + $0x78] sm:$0xff]
        %v385 = vmul.f32 %v261, %v367
        %v386 = vmul.f32 %v266, %v367
        %v387 = vmul.f32 %v271, %v367
        %v388 = vmul.f32 %v276, %v367
        %v389 = vmul.f32 %v281, %v367
        %v390 = vmul.f32 %v286, %v367
        %v391 = vmul.f32 %v291, %v367
        %v392 = vmul.f32 %v296, %v367
        %v393 = vmul.f32 %v301, %v367
        %v394 = vmul.f32 %v306, %v367
        %v395 = vmul.f32 %v311, %v367
        %v396 = vmul.f32 %v316, %v367
        %v397 = vmul.f32 %v321, %v367
        %v398 = vmul.f32 %v326, %v367
        %v399 = vmul.f32 %v331, %v367
        %v400 = vmul.f32 %v336, %v367
        %v401 = vadd.f32 %v369, %v385
        %v402 = vadd.f32 %v370, %v386
        %v403 = vadd.f32 %v371, %v387
        %v404 = vadd.f32 %v372, %v388
        %v405 = vadd.f32 %v373, %v389
        %v406 = vadd.f32 %v374, %v390
        %v407 = vadd.f32 %v375, %v391
        %v408 = vadd.f32 %v376, %v392
        %v409 = vadd.f32 %v377, %v393
        %v410 = vadd.f32 %v378, %v394
        %v411 = vadd.f32 %v379, %v395
        %v412 = vadd.f32 %v380, %v396
        %v413 = vadd.f32 %v381, %v397
        %v414 = vadd.f32 %v382, %v398
        %v415 = vadd.f32 %v383, %v399
        %v416 = vadd.f32 %v384, %v400
        %417 = vst [vmem:[%s368] sm:$0xff] %v401
        %418 = vst [vmem:[%s368 + $0x8] sm:$0xff] %v402
        %419 = vst [vmem:[%s368 + $0x10] sm:$0xff] %v403
        %420 = vst [vmem:[%s368 + $0x18] sm:$0xff] %v404
        %421 = vst [vmem:[%s368 + $0x20] sm:$0xff] %v405
        %422 = vst [vmem:[%s368 + $0x28] sm:$0xff] %v406
        %423 = vst [vmem:[%s368 + $0x30] sm:$0xff] %v407
        %424 = vst [vmem:[%s368 + $0x38] sm:$0xff] %v408
        %425 = vst [vmem:[%s368 + $0x40] sm:$0xff] %v409
        %426 = vst [vmem:[%s368 + $0x48] sm:$0xff] %v410
        %427 = vst [vmem:[%s368 + $0x50] sm:$0xff] %v411
        %428 = vst [vmem:[%s368 + $0x58] sm:$0xff] %v412
        %429 = vst [vmem:[%s368 + $0x60] sm:$0xff] %v413
        %430 = vst [vmem:[%s368 + $0x68] sm:$0xff] %v414
        %431 = vst [vmem:[%s368 + $0x70] sm:$0xff] %v415
        %432 = vst [vmem:[%s368 + $0x78] sm:$0xff] %v416
        // Predicated region
        $region41: #{tpu_custom_call.1} parent=23 // pred_check
          %p433 = pneg %p111
        $region42: #{tpu_custom_call.1} parent=23 // pred_check_branch
          %435 = sbr.rel (%p433) target = $region44
        $region43: #{tpu_custom_call.1} parent=23 // pred_region
          %v436 = vld [vmem:[#allocation4] sm:$0xff]
          %v437 = vld [vmem:[#allocation4 + $0x8] sm:$0xff]
          %v438 = vld [vmem:[#allocation4 + $0x10] sm:$0xff]
          %v439 = vld [vmem:[#allocation4 + $0x18] sm:$0xff]
          %v440 = vld [vmem:[#allocation4 + $0x20] sm:$0xff]
          %v441 = vld [vmem:[#allocation4 + $0x28] sm:$0xff]
          %v442 = vld [vmem:[#allocation4 + $0x30] sm:$0xff]
          %v443 = vld [vmem:[#allocation4 + $0x38] sm:$0xff]
          %v444 = vld [vmem:[#allocation4 + $0x40] sm:$0xff]
          %v445 = vld [vmem:[#allocation4 + $0x48] sm:$0xff]
          %v446 = vld [vmem:[#allocation4 + $0x50] sm:$0xff]
          %v447 = vld [vmem:[#allocation4 + $0x58] sm:$0xff]
          %v448 = vld [vmem:[#allocation4 + $0x60] sm:$0xff]
          %v449 = vld [vmem:[#allocation4 + $0x68] sm:$0xff]
          %v450 = vld [vmem:[#allocation4 + $0x70] sm:$0xff]
          %v451 = vld [vmem:[#allocation4 + $0x78] sm:$0xff]
          %452 = vst [vmem:[#allocation3] sm:$0xff] %v436
          %453 = vst [vmem:[#allocation3 + $0x8] sm:$0xff] %v437
          %454 = vst [vmem:[#allocation3 + $0x10] sm:$0xff] %v438
          %455 = vst [vmem:[#allocation3 + $0x18] sm:$0xff] %v439
          %456 = vst [vmem:[#allocation3 + $0x20] sm:$0xff] %v440
          %457 = vst [vmem:[#allocation3 + $0x28] sm:$0xff] %v441
          %458 = vst [vmem:[#allocation3 + $0x30] sm:$0xff] %v442
          %459 = vst [vmem:[#allocation3 + $0x38] sm:$0xff] %v443
          %460 = vst [vmem:[#allocation3 + $0x40] sm:$0xff] %v444
          %461 = vst [vmem:[#allocation3 + $0x48] sm:$0xff] %v445
          %462 = vst [vmem:[#allocation3 + $0x50] sm:$0xff] %v446
          %463 = vst [vmem:[#allocation3 + $0x58] sm:$0xff] %v447
          %464 = vst [vmem:[#allocation3 + $0x60] sm:$0xff] %v448
          %465 = vst [vmem:[#allocation3 + $0x68] sm:$0xff] %v449
          %466 = vst [vmem:[#allocation3 + $0x70] sm:$0xff] %v450
          %467 = vst [vmem:[#allocation3 + $0x78] sm:$0xff] %v451
        $region44: #{tpu_custom_call.1} parent=23 // pred_fallthru
          _
        // Predicated region
        $region45: #{tpu_custom_call.1} parent=23 // pred_check
          %p468 = pneg %p62
        $region46: #{tpu_custom_call.1} parent=23 // pred_check_branch
          %470 = sbr.rel (%p468) target = $region48
        $region47: #{tpu_custom_call.1} parent=23 // pred_region
          %s472 = ssub.s32 2048, 2048
          %473 = vsyncadd [#allocation8], %s472
          %s474 = sshll.u32 [#allocation9], 4
          %s475 = int_to_ptr.vmem [resolvable:$true] %s474
          %480 = dma.vmem_to_hbm [thread:$0]  %s475, 2048, %s3, [#allocation8], 128, 128, 8
        $region48: #{tpu_custom_call.1} parent=23 // pred_fallthru
          _
        // Predicated region
        $region49: #{tpu_custom_call.1} parent=23 // pred_check
          %p481 = pneg %p62
        $region50: #{tpu_custom_call.1} parent=23 // pred_check_branch
          %483 = sbr.rel (%p481) target = $region52
        $region51: #{tpu_custom_call.1} parent=23 // pred_region
          %484 = dma.done [#allocation8], 2048
        $region52: #{tpu_custom_call.1} parent=23 // pred_fallthru
          _
      $region24: #{tpu_custom_call.1} parent=5 // pred_fallthru
        _
      %p485 = scmp.le.s32.totalorder 2, %s11
      // Predicated region
      $region53: #{tpu_custom_call.1} parent=5 // pred_check
        %p486 = pneg %p485
      $region54: #{tpu_custom_call.1} parent=5 // pred_check_branch
        %488 = sbr.rel (%p486) target = $region56
      $region55: #{tpu_custom_call.1} parent=5 // pred_region
        %s489 = ssub.s32 %s11, 2
      $region56: #{tpu_custom_call.1} parent=5 // pred_fallthru
        _
    $region6: #{tpu_custom_call.1} parent=1 // loop_footer
      %s15 = sadd.s32 1, %s11
    $region7: #{tpu_custom_call.1} parent=1 // loop_footer_branch
      %10 = sbr.rel target = $region3
    $region8: #{tpu_custom_call.1} parent=1 // loop_exit
      _
    %490 = vsyncpa [#allocation7], 1
    %s491 = scalar_lea.sflag [#allocation7], 1
    %492 = vsyncpa %s491, 1
    %493 = vsyncpa [#allocation8], 1
    %s494 = scalar_lea.sflag [#allocation8], 1
    %495 = vsyncpa %s494, 1
  %496 = vsyncmov [#allocation5]
  %s497 = vpop.sfrf %496
  %p498 = scmp.eq.s32.totalorder %s497, 0
  %p499 = pneg %p498
  %501 = shalt.err (%p499)
  %s502 = scalar_lea.sflag [#allocation5], 1
  %503 = vsyncmov %s502
  %s504 = vpop.sfrf %503
  %p505 = scmp.eq.s32.totalorder %s504, 0
  %p506 = pneg %p505
  %508 = shalt.err (%p506)

</llo_original>
